<compile_context>
chip_gen: v5e
topology: v5e:2x2
jax: 0.10.0
libtpu: 0.0.40
codegen_flags: <defaults>
</compile_context>

<pallas_src>
import jax
import jax.numpy as jnp
from jax.experimental import pallas as pl
from jax.experimental.pallas import tpu as pltpu


# ----------------------------------------------------------------------------
# Kernel
# ----------------------------------------------------------------------------
def _make_kernel(epilogue_dtype):
    """Fused 3-layer MLP: (x @ W + b) -> leaky_relu(0.1), repeated 3x.

    BN (eval) already folded into W/b; dropout is identity in eval mode.
    Matmuls: bf16 x bf16 -> f32 accumulation on the MXU.  Bias-add + leaky-relu
    run in `epilogue_dtype` (bf16 on v6e/v7x, f32 on v5e)."""
    neg_slope = 0.1  # nn.LeakyReLU(0.1) per the PyTorch spec

    def kernel(x_ref, w1_ref, b1_ref, w2_ref, b2_ref, w3_ref, b3_ref, o_ref):
        def layer(h_bf16, w_ref, b_ref):
            acc = jnp.dot(h_bf16, w_ref[...],
                          preferred_element_type=jnp.float32)
            acc = acc.astype(epilogue_dtype) + b_ref[...].astype(epilogue_dtype)
            return jnp.maximum(acc, neg_slope * acc)

        h = layer(x_ref[...], w1_ref, b1_ref)               # fc1+bn1+lrelu
        h = layer(h.astype(jnp.bfloat16), w2_ref, b2_ref)   # fc2+bn2+lrelu(+drop)
        h = layer(h.astype(jnp.bfloat16), w3_ref, b3_ref)   # fc3+bn3+lrelu(+drop)
        o_ref[...] = h.astype(o_ref.dtype)

    return kernel


# ----------------------------------------------------------------------------
# Wrapper
# ----------------------------------------------------------------------------
def _round_up(x, m):
    return ((x + m - 1) // m) * m


def _pick_tile_b(B, max_tile_b, min_split_b=256):
    """Batch-tile size (static Python int).

    - Single grid step for small batches, rounded up to a multiple of 8 so
      vector loads/stores stay unmasked (Pallas masks the partial block).
    - >= 2 grid steps when B >= min_split_b so the 'parallel' axis can shard
      across both v7x TensorCores.
    - Capped at max_tile_b for large batches (amortizes per-step overhead
      while staying well inside every generation's scoped VMEM)."""
    if B < min_split_b:
        return min(_round_up(B, 8), max_tile_b)
    return min(_round_up(pl.cdiv(B, 2), 8), max_tile_b)


def photometric_mlp(x, params, *, max_tile_b=2048, out_dtype=jnp.float32,
                    epilogue_dtype=jnp.float32):
    """x: [B, input_size].  params: BN-folded weights (bf16) / biases (f32).

    out_dtype=jnp.bfloat16 is recommended when downstream consumers allow it
    (the B x 128 output is the dominant HBM stream)."""
    B, D_in = x.shape
    w1, b1 = params["w1"], params["b1"]   # [D_in, 256] bf16, [1, 256] f32
    w2, b2 = params["w2"], params["b2"]   # [256, 128]  bf16, [1, 128] f32
    w3, b3 = params["w3"], params["b3"]   # [128, 128]  bf16, [1, 128] f32
    H1, H2, H3 = w1.shape[1], w2.shape[1], w3.shape[1]

    # Cast the input to bf16 on the host: numerics unchanged (kernel consumed
    # bf16 anyway), input DMA halves, in-kernel cast disappears.
    x_in = x if x.dtype == jnp.bfloat16 else x.astype(jnp.bfloat16)

    tile_b = _pick_tile_b(B, max_tile_b)
    grid = (pl.cdiv(B, tile_b),)   # ragged last block handled by Pallas masking

    full = lambda shape: pl.BlockSpec(shape, lambda i: (0, 0))  # resident weights

    flops = 2 * B * (D_in * H1 + H1 * H2 + H2 * H3)
    bytes_accessed = (
        x_in.size * x_in.dtype.itemsize
        + sum(a.size * a.dtype.itemsize for a in (w1, b1, w2, b2, w3, b3))
        + B * H3 * jnp.dtype(out_dtype).itemsize)

    return pl.pallas_call(
        _make_kernel(epilogue_dtype),
        out_shape=jax.ShapeDtypeStruct((B, H3), out_dtype),
        grid_spec=pltpu.PrefetchScalarGridSpec(
            num_scalar_prefetch=0,
            grid=grid,
            in_specs=[
                pl.BlockSpec((tile_b, D_in), lambda i: (i, 0)),
                full((D_in, H1)), full((1, H1)),
                full((H1, H2)),   full((1, H2)),
                full((H2, H3)),   full((1, H3)),
            ],
            out_specs=pl.BlockSpec((tile_b, H3), lambda i: (i, 0)),
        ),
        compiler_params=pltpu.CompilerParams(
            dimension_semantics=("parallel",),
            vmem_limit_bytes=32 << 20),
        cost_estimate=pl.CostEstimate(
            flops=flops, transcendentals=0, bytes_accessed=bytes_accessed),
    )(x_in, w1, b1, w2, b2, w3, b3)


# ----------------------------------------------------------------------------
# Parameter construction (BN folded into Linear) and reference
# ----------------------------------------------------------------------------
def _fold_bn(w_t, b, gamma, beta, mean, var, eps=1e-5):
    """Fold eval-mode BatchNorm1d into a Linear (weight already transposed
    to [in, out]).  bn(x@W + b) = x@(W*s) + ((b - mean)*s + beta)."""
    scale = gamma / jnp.sqrt(var + eps)               # [out]
    w_eff = w_t * scale[None, :]                      # [in, out]
    b_eff = (b - mean) * scale + beta                 # [out]
    # Weights bf16 for MXU / DMA; biases stored f32 (cast in-kernel as needed).
    return w_eff.astype(jnp.bfloat16), b_eff[None, :].astype(jnp.float32)


def init_params(key, input_size):
    """Deterministic synthetic parameters matching PhotometricMLP.__init__."""
    dims = [(input_size, 256), (256, 128), (128, 128)]
    params = {}
    for idx, (d_in, d_out) in enumerate(dims, start=1):
        key, kw, kb, kg, kbe, km, kv = jax.random.split(key, 7)
        bound = 1.0 / jnp.sqrt(d_in)
        w = jax.random.uniform(kw, (d_out, d_in), jnp.float32, -bound, bound)
        b = jax.random.uniform(kb, (d_out,), jnp.float32, -bound, bound)
        gamma = 1.0 + 0.1 * jax.random.normal(kg, (d_out,), jnp.float32)
        beta = 0.1 * jax.random.normal(kbe, (d_out,), jnp.float32)
        mean = 0.05 * jax.random.normal(km, (d_out,), jnp.float32)
        var = 1.0 + 0.1 * jax.random.uniform(kv, (d_out,), jnp.float32)
        w_eff, b_eff = _fold_bn(w.T, b, gamma, beta, mean, var)
        params[f"w{idx}"] = w_eff
        params[f"b{idx}"] = b_eff
    return params


def reference_forward(x, params, *, epilogue_dtype=jnp.float32,
                      out_dtype=jnp.float32):
    """Plain-JAX reference with math identical to the kernel."""
    h = x.astype(jnp.bfloat16)
    acc = None
    for i in (1, 2, 3):
        acc = jnp.dot(h, params[f"w{i}"], preferred_element_type=jnp.float32)
        acc = acc.astype(epilogue_dtype) + params[f"b{i}"].astype(epilogue_dtype)
        acc = jnp.maximum(acc, 0.1 * acc)
        h = acc.astype(jnp.bfloat16)
    return acc.astype(out_dtype)


def default_epilogue_dtype():
    """bf16 epilogue on bf16-capable VPUs (v6e/v7x); f32 elsewhere (v5e has no
    bf16 VALU).  Conservative f32 fallback if the device kind is unknown."""
    try:
        kind = jax.devices()[0].device_kind.lower()
    except Exception:
        kind = ""
    return jnp.bfloat16 if ("v6" in kind or "v7" in kind) else jnp.float32


# ----------------------------------------------------------------------------
# Demo / self-test
# ----------------------------------------------------------------------------
if __name__ == "__main__":
    key = jax.random.PRNGKey(0)
    k_param, k_x1, k_x2 = jax.random.split(key, 3)

    input_size = 32
    params = init_params(k_param, input_size)
    epi_dtype = default_epilogue_dtype()

    # Small batch: single grid step, f32 output.
    B1 = 16
    x1 = jax.random.normal(k_x1, (B1, input_size), jnp.float32)
    out1 = jax.block_until_ready(
        photometric_mlp(x1, params, epilogue_dtype=epi_dtype))
    ref1 = reference_forward(x1, params, epilogue_dtype=epi_dtype)
    assert out1.shape == (B1, 128)
    assert jnp.allclose(out1.astype(jnp.float32), ref1.astype(jnp.float32),
                        atol=2e-2, rtol=2e-2), "mismatch vs reference (small)"

    # Mid batch, not a multiple of the tile: >=2 grid steps (v7x megacore),
    # partial last block via Pallas masking (no host pad / output slice),
    # bf16 output to halve the dominant HBM writeback stream.
    B2 = 300
    x2 = jax.random.normal(k_x2, (B2, input_size), jnp.float32)
    out2 = jax.block_until_ready(
        photometric_mlp(x2, params, epilogue_dtype=epi_dtype,
                        out_dtype=jnp.bfloat16))
    ref2 = reference_forward(x2, params, epilogue_dtype=epi_dtype,
                             out_dtype=jnp.bfloat16)
    assert out2.shape == (B2, 128)
    assert jnp.allclose(out2.astype(jnp.float32), ref2.astype(jnp.float32),
                        atol=2e-2, rtol=2e-2), "mismatch vs reference (ragged)"

    print("KERNEL_OK")
</pallas_src>

<mosaic_0001>
module attributes {stable_mosaic.version = 11 : i64} {
  func.func @kernel(%arg0: i32, %arg1: memref<16x32xbf16, #tpu.memory_space<vmem>>, %arg2: memref<32x256xbf16, #tpu.memory_space<vmem>>, %arg3: memref<1x256xf32, #tpu.memory_space<vmem>>, %arg4: memref<256x128xbf16, #tpu.memory_space<vmem>>, %arg5: memref<1x128xf32, #tpu.memory_space<vmem>>, %arg6: memref<128x128xbf16, #tpu.memory_space<vmem>>, %arg7: memref<1x128xf32, #tpu.memory_space<vmem>>, %arg8: memref<16x128xf32, #tpu.memory_space<vmem>>) attributes {dimension_semantics = [#tpu.dimension_semantics<parallel>], iteration_bounds = array<i64: 1>, scalar_prefetch = 0 : i64, scratch_operands = 0 : i64, tpu.core_type = #tpu.core_type<tc>, window_params = [{transform_indices = @transform_0, window_bounds = array<i64: 16, 32>}, {pipeline_mode = #tpu.pipeline_mode<synchronous>, transform_indices = @transform_1, window_bounds = array<i64: 32, 256>}, {pipeline_mode = #tpu.pipeline_mode<synchronous>, transform_indices = @transform_2, window_bounds = array<i64: 1, 256>}, {pipeline_mode = #tpu.pipeline_mode<synchronous>, transform_indices = @transform_3, window_bounds = array<i64: 256, 128>}, {pipeline_mode = #tpu.pipeline_mode<synchronous>, transform_indices = @transform_4, window_bounds = array<i64: 1, 128>}, {pipeline_mode = #tpu.pipeline_mode<synchronous>, transform_indices = @transform_5, window_bounds = array<i64: 128, 128>}, {pipeline_mode = #tpu.pipeline_mode<synchronous>, transform_indices = @transform_6, window_bounds = array<i64: 1, 128>}, {transform_indices = @transform_7, window_bounds = array<i64: 16, 128>}]} {
    %c0 = arith.constant 0 : index
    %c0_0 = arith.constant 0 : index
    %0 = vector.load %arg1[%c0, %c0_0] : memref<16x32xbf16, #tpu.memory_space<vmem>>, vector<16x32xbf16>
    %c0_1 = arith.constant 0 : index
    %c0_2 = arith.constant 0 : index
    %1 = vector.load %arg2[%c0_1, %c0_2] : memref<32x256xbf16, #tpu.memory_space<vmem>>, vector<32x256xbf16>
    %cst = arith.constant dense<0.000000e+00> : vector<16x256xf32>
    %2 = tpu.matmul %0, %1, %cst {dimension_numbers = #tpu.dot_dimension_numbers<[1], [0], [0], [1], [0, 0, 1, 1], [], []>} : vector<16x32xbf16>, vector<32x256xbf16>, vector<16x256xf32> -> vector<16x256xf32>
    %c0_3 = arith.constant 0 : index
    %c0_4 = arith.constant 0 : index
    %3 = vector.load %arg3[%c0_3, %c0_4] : memref<1x256xf32, #tpu.memory_space<vmem>>, vector<1x256xf32>
    %4 = vector.broadcast %3 : vector<1x256xf32> to vector<16x256xf32>
    %5 = arith.addf %2, %4 : vector<16x256xf32>
    %cst_5 = arith.constant 1.000000e-01 : f32
    %6 = vector.broadcast %cst_5 : f32 to vector<16x256xf32>
    %7 = arith.mulf %6, %5 : vector<16x256xf32>
    %8 = arith.maximumf %5, %7 : vector<16x256xf32>
    %9 = arith.truncf %8 : vector<16x256xf32> to vector<16x256xbf16>
    %c0_6 = arith.constant 0 : index
    %c0_7 = arith.constant 0 : index
    %10 = vector.load %arg4[%c0_6, %c0_7] : memref<256x128xbf16, #tpu.memory_space<vmem>>, vector<256x128xbf16>
    %cst_8 = arith.constant dense<0.000000e+00> : vector<16x128xf32>
    %11 = tpu.matmul %9, %10, %cst_8 {dimension_numbers = #tpu.dot_dimension_numbers<[1], [0], [0], [1], [0, 0, 1, 1], [], []>} : vector<16x256xbf16>, vector<256x128xbf16>, vector<16x128xf32> -> vector<16x128xf32>
    %c0_9 = arith.constant 0 : index
    %c0_10 = arith.constant 0 : index
    %12 = vector.load %arg5[%c0_9, %c0_10] : memref<1x128xf32, #tpu.memory_space<vmem>>, vector<1x128xf32>
    %13 = vector.broadcast %12 : vector<1x128xf32> to vector<16x128xf32>
    %14 = arith.addf %11, %13 : vector<16x128xf32>
    %cst_11 = arith.constant 1.000000e-01 : f32
    %15 = vector.broadcast %cst_11 : f32 to vector<16x128xf32>
    %16 = arith.mulf %15, %14 : vector<16x128xf32>
    %17 = arith.maximumf %14, %16 : vector<16x128xf32>
    %18 = arith.truncf %17 : vector<16x128xf32> to vector<16x128xbf16>
    %c0_12 = arith.constant 0 : index
    %c0_13 = arith.constant 0 : index
    %19 = vector.load %arg6[%c0_12, %c0_13] : memref<128x128xbf16, #tpu.memory_space<vmem>>, vector<128x128xbf16>
    %cst_14 = arith.constant dense<0.000000e+00> : vector<16x128xf32>
    %20 = tpu.matmul %18, %19, %cst_14 {dimension_numbers = #tpu.dot_dimension_numbers<[1], [0], [0], [1], [0, 0, 1, 1], [], []>} : vector<16x128xbf16>, vector<128x128xbf16>, vector<16x128xf32> -> vector<16x128xf32>
    %c0_15 = arith.constant 0 : index
    %c0_16 = arith.constant 0 : index
    %21 = vector.load %arg7[%c0_15, %c0_16] : memref<1x128xf32, #tpu.memory_space<vmem>>, vector<1x128xf32>
    %22 = vector.broadcast %21 : vector<1x128xf32> to vector<16x128xf32>
    %23 = arith.addf %20, %22 : vector<16x128xf32>
    %cst_17 = arith.constant 1.000000e-01 : f32
    %24 = vector.broadcast %cst_17 : f32 to vector<16x128xf32>
    %25 = arith.mulf %24, %23 : vector<16x128xf32>
    %26 = arith.maximumf %23, %25 : vector<16x128xf32>
    %c0_18 = arith.constant 0 : index
    %c0_19 = arith.constant 0 : index
    %27 = vector.load %arg8[%c0_18, %c0_19] : memref<16x128xf32, #tpu.memory_space<vmem>>, vector<16x128xf32>
    tpu.vector_store %arg8[%c0_18, %c0_19], %26 {strides = array<i32>} : memref<16x128xf32, #tpu.memory_space<vmem>>, vector<16x128xf32>,
    return
  }
  func.func @transform_0(%arg0: i32) -> (i32, i32) {
    %c0_i32 = arith.constant 0 : i32
    %c0_i32_0 = arith.constant 0 : i32
    return %arg0, %c0_i32 : i32, i32
  }
  func.func @transform_1(%arg0: i32) -> (i32, i32) {
    %c0_i32 = arith.constant 0 : i32
    %c0_i32_0 = arith.constant 0 : i32
    %c0_i32_1 = arith.constant 0 : i32
    return %c0_i32, %c0_i32_0 : i32, i32
  }
  func.func @transform_2(%arg0: i32) -> (i32, i32) {
    %c0_i32 = arith.constant 0 : i32
    %c0_i32_0 = arith.constant 0 : i32
    %c0_i32_1 = arith.constant 0 : i32
    return %c0_i32, %c0_i32_0 : i32, i32
  }
  func.func @transform_3(%arg0: i32) -> (i32, i32) {
    %c0_i32 = arith.constant 0 : i32
    %c0_i32_0 = arith.constant 0 : i32
    %c0_i32_1 = arith.constant 0 : i32
    return %c0_i32, %c0_i32_0 : i32, i32
  }
  func.func @transform_4(%arg0: i32) -> (i32, i32) {
    %c0_i32 = arith.constant 0 : i32
    %c0_i32_0 = arith.constant 0 : i32
    %c0_i32_1 = arith.constant 0 : i32
    return %c0_i32, %c0_i32_0 : i32, i32
  }
  func.func @transform_5(%arg0: i32) -> (i32, i32) {
    %c0_i32 = arith.constant 0 : i32
    %c0_i32_0 = arith.constant 0 : i32
    %c0_i32_1 = arith.constant 0 : i32
    return %c0_i32, %c0_i32_0 : i32, i32
  }
  func.func @transform_6(%arg0: i32) -> (i32, i32) {
    %c0_i32 = arith.constant 0 : i32
    %c0_i32_0 = arith.constant 0 : i32
    %c0_i32_1 = arith.constant 0 : i32
    return %c0_i32, %c0_i32_0 : i32, i32
  }
  func.func @transform_7(%arg0: i32) -> (i32, i32) {
    %c0_i32 = arith.constant 0 : i32
    %c0_i32_0 = arith.constant 0 : i32
    return %arg0, %c0_i32 : i32, i32
  }
}

</mosaic_0001>

<llo_original>
// kernel: tpu_custom_call.1
$region0: #{tpu_custom_call.1}
  #allocation0 [shape = 'u32[]', space=smem, size = 0x4, offset = 0x4, fixed_abs, tag = 'smem constant byte address 0x4 - core index']
  #allocation1 [shape = 'u32[72,128]{1,0:T(1,128)}', space=vmem, size = 0x9000, scoped, tag = 'internal scratch']
  %s0 = inlined_call_operand.hbm [shape: bf16[16,32], index: 0, kind: input, shape index: {}]
  %s1 = inlined_call_operand.hbm [shape: bf16[32,256], index: 1, kind: input, shape index: {}]
  %s2 = inlined_call_operand.hbm [shape: f32[1,256], index: 2, kind: input, shape index: {}]
  %s3 = inlined_call_operand.hbm [shape: bf16[256,128], index: 3, kind: input, shape index: {}]
  %s4 = inlined_call_operand.vmem [shape: f32[1,128], index: 4, kind: input, shape index: {}]
  %s5 = inlined_call_operand.hbm [shape: bf16[128,128], index: 5, kind: input, shape index: {}]
  %s6 = inlined_call_operand.vmem [shape: f32[1,128], index: 6, kind: input, shape index: {}]
  %s7 = inlined_call_operand.hbm [shape: f32[16,128], index: 7, kind: output, shape index: {}]
  %s8 = sld [smem:[#allocation0]]
  $region58: #{tpu_custom_call.1} parent=0
    _
  %s10 = ssub.s32 1, %s8
  %s11 = scalar_select 0, %s10, %s8
  $region1: #{tpu_custom_call.1} parent=0
    #allocation2 [shape = 'u8[4096]{0}', space=vmem, size = 0x1000, scoped, tag = 'input window, operand 0, single buffered']
    #allocation3 [shape = 's32[1]{0}', space=sflag, size = 0x4, scoped, tag = 'scoped memory for tpu_custom_call.1']
    #allocation4 [shape = 's32[1]{0}', space=sflag, size = 0x4, scoped, tag = 'scoped memory for tpu_custom_call.1']
    #allocation5 [shape = 'u8[16384]{0}', space=vmem, size = 0x4000, scoped, tag = 'input window, operand 1, single buffered']
    #allocation6 [shape = 's32[1]{0}', space=sflag, size = 0x4, scoped, tag = 'scoped memory for tpu_custom_call.1']
    #allocation7 [shape = 'u8[1024]{0}', space=vmem, size = 0x400, scoped, tag = 'input window, operand 2, single buffered']
    #allocation8 [shape = 'u8[65536]{0}', space=vmem, size = 0x10000, scoped, tag = 'input window, operand 3, single buffered']
    #allocation9 [shape = 's32[1]{0}', space=sflag, size = 0x4, scoped, tag = 'scoped memory for tpu_custom_call.1']
    #allocation10 [shape = 'u8[32768]{0}', space=vmem, size = 0x8000, scoped, tag = 'input window, operand 5, single buffered']
    #allocation11 [shape = 'u8[8192]{0}', space=vmem, size = 0x2000, scoped, tag = 'output window, operand 0, single buffered']
    %12 = vsyncpa [#allocation3], 0
    %13 = vsyncpa [#allocation6], 0
    %14 = vsyncpa [#allocation9], 0
    %15 = vsyncpa [#allocation4], 0
    // Predicated region
    $region2: #{tpu_custom_call.1} parent=1 // pred_check
      _
    $region3: #{tpu_custom_call.1} parent=1 // pred_check_branch
      %17 = sbr.rel (0) target = $region5
    $region4: #{tpu_custom_call.1} parent=1 // pred_region
      %19 = vsyncadd [#allocation3], 0
      %s20 = sshll.u32 %s0, 4
      %s21 = int_to_ptr.hbm [resolvable:$true] %s20
      %s22 = sshll.u32 [#allocation2], 4
      %s23 = int_to_ptr.vmem [resolvable:$true] %s22
      %28 = dma.hbm_to_vmem [thread:$0]  %s21, 128, %s23, [#allocation3], 64, 64, 4
    $region5: #{tpu_custom_call.1} parent=1 // pred_fallthru
      _
    // Predicated region
    $region6: #{tpu_custom_call.1} parent=1 // pred_check
      _
    $region7: #{tpu_custom_call.1} parent=1 // pred_check_branch
      %30 = sbr.rel (0) target = $region9
    $region8: #{tpu_custom_call.1} parent=1 // pred_region
      %32 = vsyncadd [#allocation6], 0
      %s33 = sshll.u32 %s1, 4
      %s34 = int_to_ptr.hbm [resolvable:$true] %s33
      %s35 = sshll.u32 [#allocation5], 4
      %s36 = int_to_ptr.vmem [resolvable:$true] %s35
      %41 = dma.hbm_to_vmem [thread:$0]  %s34, 512, %s36, [#allocation6], 128, 128, 8
    $region9: #{tpu_custom_call.1} parent=1 // pred_fallthru
      _
    // Predicated region
    $region10: #{tpu_custom_call.1} parent=1 // pred_check
      _
    $region11: #{tpu_custom_call.1} parent=1 // pred_check_branch
      %43 = sbr.rel (0) target = $region13
    $region12: #{tpu_custom_call.1} parent=1 // pred_region
      %45 = vsyncadd [#allocation6], 0
      %s47 = sshll.u32 %s2, 4
      %s48 = int_to_ptr.hbm [resolvable:$true] %s47
      %s49 = sshll.u32 [#allocation7], 4
      %s50 = int_to_ptr.vmem [resolvable:$true] %s49
      %52 = dma.hbm_to_vmem [thread:$0]  %s48, 32, %s50, [#allocation6]
    $region13: #{tpu_custom_call.1} parent=1 // pred_fallthru
      _
    // Predicated region
    $region14: #{tpu_custom_call.1} parent=1 // pred_check
      _
    $region15: #{tpu_custom_call.1} parent=1 // pred_check_branch
      %54 = sbr.rel (0) target = $region17
    $region16: #{tpu_custom_call.1} parent=1 // pred_region
      %56 = vsyncadd [#allocation9], 0
      %s57 = sshll.u32 %s3, 4
      %s58 = int_to_ptr.hbm [resolvable:$true] %s57
      %s59 = sshll.u32 [#allocation8], 4
      %s60 = int_to_ptr.vmem [resolvable:$true] %s59
      %65 = dma.hbm_to_vmem [thread:$0]  %s58, 2048, %s60, [#allocation9], 64, 64, 4
    $region17: #{tpu_custom_call.1} parent=1 // pred_fallthru
      _
    // Predicated region
    $region18: #{tpu_custom_call.1} parent=1 // pred_check
      _
    $region19: #{tpu_custom_call.1} parent=1 // pred_check_branch
      %67 = sbr.rel (0) target = $region21
    $region20: #{tpu_custom_call.1} parent=1 // pred_region
      _
    $region21: #{tpu_custom_call.1} parent=1 // pred_fallthru
      _
    // Predicated region
    $region22: #{tpu_custom_call.1} parent=1 // pred_check
      _
    $region23: #{tpu_custom_call.1} parent=1 // pred_check_branch
      %69 = sbr.rel (0) target = $region25
    $region24: #{tpu_custom_call.1} parent=1 // pred_region
      %71 = vsyncadd [#allocation9], 0
      %s72 = sshll.u32 %s5, 4
      %s73 = int_to_ptr.hbm [resolvable:$true] %s72
      %s74 = sshll.u32 [#allocation10], 4
      %s75 = int_to_ptr.vmem [resolvable:$true] %s74
      %80 = dma.hbm_to_vmem [thread:$0]  %s73, 1024, %s75, [#allocation9], 64, 64, 4
    $region25: #{tpu_custom_call.1} parent=1 // pred_fallthru
      _
    // Predicated region
    $region26: #{tpu_custom_call.1} parent=1 // pred_check
      _
    $region27: #{tpu_custom_call.1} parent=1 // pred_check_branch
      %82 = sbr.rel (0) target = $region29
    $region28: #{tpu_custom_call.1} parent=1 // pred_region
      _
    $region29: #{tpu_custom_call.1} parent=1 // pred_fallthru
      _
    // Predicated region
    $region30: #{tpu_custom_call.1} parent=1 // pred_check
      _
    $region31: #{tpu_custom_call.1} parent=1 // pred_check_branch
      %84 = sbr.rel (0) target = $region33
    $region32: #{tpu_custom_call.1} parent=1 // pred_region
      %86 = dma.done [#allocation3], 128
    $region33: #{tpu_custom_call.1} parent=1 // pred_fallthru
      _
    // Predicated region
    $region34: #{tpu_custom_call.1} parent=1 // pred_check
      _
    $region35: #{tpu_custom_call.1} parent=1 // pred_check_branch
      %88 = sbr.rel (0) target = $region37
    $region36: #{tpu_custom_call.1} parent=1 // pred_region
      %90 = dma.done [#allocation6], 512
    $region37: #{tpu_custom_call.1} parent=1 // pred_fallthru
      _
    // Predicated region
    $region38: #{tpu_custom_call.1} parent=1 // pred_check
      _
    $region39: #{tpu_custom_call.1} parent=1 // pred_check_branch
      %92 = sbr.rel (0) target = $region41
    $region40: #{tpu_custom_call.1} parent=1 // pred_region
      %94 = dma.done [#allocation6], 32
    $region41: #{tpu_custom_call.1} parent=1 // pred_fallthru
      _
    // Predicated region
    $region42: #{tpu_custom_call.1} parent=1 // pred_check
      _
    $region43: #{tpu_custom_call.1} parent=1 // pred_check_branch
      %96 = sbr.rel (0) target = $region45
    $region44: #{tpu_custom_call.1} parent=1 // pred_region
      %98 = dma.done [#allocation9], 2048
    $region45: #{tpu_custom_call.1} parent=1 // pred_fallthru
      _
    // Predicated region
    $region46: #{tpu_custom_call.1} parent=1 // pred_check
      _
    $region47: #{tpu_custom_call.1} parent=1 // pred_check_branch
      %100 = sbr.rel (0) target = $region49
    $region48: #{tpu_custom_call.1} parent=1 // pred_region
      %102 = dma.done [#allocation9], 1024
    $region49: #{tpu_custom_call.1} parent=1 // pred_fallthru
      _
    %v104 = vld [vmem:[#allocation2] sm:$0xf]
    %v105 = vld [vmem:[#allocation2 + $0x4] sm:$0xf]
    %v106 = vld [vmem:[#allocation5] sm:$0xff]
    %v107 = vld [vmem:[#allocation5 + $0x8] sm:$0xff]
    %v108 = vld [vmem:[#allocation5 + $0x10] sm:$0xff]
    %v109 = vld [vmem:[#allocation5 + $0x18] sm:$0xff]
    %v110 = vld [vmem:[#allocation7] sm:$0x3]
    %v112 = vperm.slane %v110, 0
    %v113 = vperm.slane %v110, 1
    %v118 = vunpack.c.l.b16 %v104
    %v119 = vunpack.c.l.b16 %v105
    %v120 = vpack.c.b16 %v119, %v118
    %v125 = vunpack.c.l.b16 %v106
    %v126 = vunpack.c.h.b16 %v106
    %v127 = vunpack.c.l.b16 %v107
    %v128 = vunpack.c.h.b16 %v107
    %v129 = vunpack.c.l.b16 %v108
    %v130 = vunpack.c.h.b16 %v108
    %v131 = vunpack.c.l.b16 %v109
    %v132 = vunpack.c.h.b16 %v109
    %v133 = vpack.c.b16 %v127, %v125
    %v134 = vpack.c.b16 %v128, %v126
    %v135 = vpack.c.b16 %v131, %v129
    %v136 = vpack.c.b16 %v132, %v130
    %vm141 = vcmask 261120
    %v143 = vsel %vm141, %v120, 0
    %145 = vmatpush.bf16.msra.mxu0 0
    %146 = vmatpush.bf16.msra.mxu0 0
    %147 = vmatpush.bf16.msra.mxu0 0
    %148 = vmatpush.bf16.msra.mxu0 0
    %149 = vmatpush.bf16.msra.mxu0 0
    %150 = vmatpush.bf16.msra.mxu0 0
    %151 = vmatpush.bf16.msra.mxu0 %v135
    %152 = vmatpush.bf16.msra.mxu0 %v133
    %153 = vmatmul.bf16.gmra.mxu0 %v143
    %v154 = vpop.f32.mrf.mxu0
    %v155 = vadd.f32 %v112, %v154
    %v156 = vpop.f32.mrf.mxu0
    %v157 = vadd.f32 %v112, %v156
    %158 = vdwg.mxu0
    %159 = vmatpush.bf16.msra.mxu0 0
    %160 = vmatpush.bf16.msra.mxu0 0
    %161 = vmatpush.bf16.msra.mxu0 0
    %162 = vmatpush.bf16.msra.mxu0 0
    %163 = vmatpush.bf16.msra.mxu0 0
    %164 = vmatpush.bf16.msra.mxu0 0
    %165 = vmatpush.bf16.msra.mxu0 %v136
    %166 = vmatpush.bf16.msra.mxu0 %v134
    %167 = vmatmul.bf16.gmra.mxu0 %v143
    %v168 = vpop.f32.mrf.mxu0
    %v169 = vadd.f32 %v113, %v168
    %v170 = vpop.f32.mrf.mxu0
    %v171 = vadd.f32 %v113, %v170
    %172 = vdwg.mxu0
    %v173 = vmul.f32 %v155, 0.1
    %v174 = vmul.f32 %v169, 0.1
    %v175 = vmul.f32 %v157, 0.1
    %v176 = vmul.f32 %v171, 0.1
    %v177 = vmax.f32 %v155, %v173
    %v178 = vmax.f32 %v169, %v174
    %v179 = vmax.f32 %v157, %v175
    %v180 = vmax.f32 %v171, %v176
    %v181 = vpack.c.bf16 %v179, %v177
    %v182 = vpack.c.bf16 %v180, %v178
    %v183 = vld [vmem:[#allocation8] sm:$0xf]
    %v184 = vld [vmem:[#allocation8 + $0x4] sm:$0xf]
    %v185 = vld [vmem:[#allocation8 + $0x8] sm:$0xf]
    %v186 = vld [vmem:[#allocation8 + $0xc] sm:$0xf]
    %v187 = vld [vmem:[#allocation8 + $0x10] sm:$0xf]
    %v188 = vld [vmem:[#allocation8 + $0x14] sm:$0xf]
    %v189 = vld [vmem:[#allocation8 + $0x18] sm:$0xf]
    %v190 = vld [vmem:[#allocation8 + $0x1c] sm:$0xf]
    %v191 = vld [vmem:[#allocation8 + $0x20] sm:$0xf]
    %v192 = vld [vmem:[#allocation8 + $0x24] sm:$0xf]
    %v193 = vld [vmem:[#allocation8 + $0x28] sm:$0xf]
    %v194 = vld [vmem:[#allocation8 + $0x2c] sm:$0xf]
    %v195 = vld [vmem:[#allocation8 + $0x30] sm:$0xf]
    %v196 = vld [vmem:[#allocation8 + $0x34] sm:$0xf]
    %v197 = vld [vmem:[#allocation8 + $0x38] sm:$0xf]
    %v198 = vld [vmem:[#allocation8 + $0x3c] sm:$0xf]
    %v199 = vld [vmem:[#allocation8 + $0x40] sm:$0xf]
    %v200 = vld [vmem:[#allocation8 + $0x44] sm:$0xf]
    %v201 = vld [vmem:[#allocation8 + $0x48] sm:$0xf]
    %v202 = vld [vmem:[#allocation8 + $0x4c] sm:$0xf]
    %v203 = vld [vmem:[#allocation8 + $0x50] sm:$0xf]
    %v204 = vld [vmem:[#allocation8 + $0x54] sm:$0xf]
    %v205 = vld [vmem:[#allocation8 + $0x58] sm:$0xf]
    %v206 = vld [vmem:[#allocation8 + $0x5c] sm:$0xf]
    %v207 = vld [vmem:[#allocation8 + $0x60] sm:$0xf]
    %v208 = vld [vmem:[#allocation8 + $0x64] sm:$0xf]
    %v209 = vld [vmem:[#allocation8 + $0x68] sm:$0xf]
    %v210 = vld [vmem:[#allocation8 + $0x6c] sm:$0xf]
    %v211 = vld [vmem:[#allocation8 + $0x70] sm:$0xf]
    %v212 = vld [vmem:[#allocation8 + $0x74] sm:$0xf]
    %v213 = vld [vmem:[#allocation8 + $0x78] sm:$0xf]
    %v214 = vld [vmem:[#allocation8 + $0x7c] sm:$0xf]
    %v215 = vld [vmem:[%s4] sm:$0x1]
    %v217 = vperm.slane %v215, 0
    %v251 = vunpack.c.l.b16 %v183
    %v252 = vunpack.c.l.b16 %v184
    %v253 = vunpack.c.l.b16 %v185
    %v254 = vunpack.c.l.b16 %v186
    %v255 = vunpack.c.l.b16 %v187
    %v256 = vunpack.c.l.b16 %v188
    %v257 = vunpack.c.l.b16 %v189
    %v258 = vunpack.c.l.b16 %v190
    %v259 = vunpack.c.l.b16 %v191
    %v260 = vunpack.c.l.b16 %v192
    %v261 = vunpack.c.l.b16 %v193
    %v262 = vunpack.c.l.b16 %v194
    %v263 = vunpack.c.l.b16 %v195
    %v264 = vunpack.c.l.b16 %v196
    %v265 = vunpack.c.l.b16 %v197
    %v266 = vunpack.c.l.b16 %v198
    %v267 = vunpack.c.l.b16 %v199
    %v268 = vunpack.c.l.b16 %v200
    %v269 = vunpack.c.l.b16 %v201
    %v270 = vunpack.c.l.b16 %v202
    %v271 = vunpack.c.l.b16 %v203
    %v272 = vunpack.c.l.b16 %v204
    %v273 = vunpack.c.l.b16 %v205
    %v274 = vunpack.c.l.b16 %v206
    %v275 = vunpack.c.l.b16 %v207
    %v276 = vunpack.c.l.b16 %v208
    %v277 = vunpack.c.l.b16 %v209
    %v278 = vunpack.c.l.b16 %v210
    %v279 = vunpack.c.l.b16 %v211
    %v280 = vunpack.c.l.b16 %v212
    %v281 = vunpack.c.l.b16 %v213
    %v282 = vunpack.c.l.b16 %v214
    %v283 = vpack.c.b16 %v252, %v251
    %v284 = vpack.c.b16 %v254, %v253
    %v285 = vpack.c.b16 %v256, %v255
    %v286 = vpack.c.b16 %v258, %v257
    %v287 = vpack.c.b16 %v260, %v259
    %v288 = vpack.c.b16 %v262, %v261
    %v289 = vpack.c.b16 %v264, %v263
    %v290 = vpack.c.b16 %v266, %v265
    %v291 = vpack.c.b16 %v268, %v267
    %v292 = vpack.c.b16 %v270, %v269
    %v293 = vpack.c.b16 %v272, %v271
    %v294 = vpack.c.b16 %v274, %v273
    %v295 = vpack.c.b16 %v276, %v275
    %v296 = vpack.c.b16 %v278, %v277
    %v297 = vpack.c.b16 %v280, %v279
    %v298 = vpack.c.b16 %v282, %v281
    %315 = vmatpush.bf16.msra.mxu0 %v290
    %316 = vmatpush.bf16.msra.mxu0 %v289
    %317 = vmatpush.bf16.msra.mxu0 %v288
    %318 = vmatpush.bf16.msra.mxu0 %v287
    %319 = vmatpush.bf16.msra.mxu0 %v286
    %320 = vmatpush.bf16.msra.mxu0 %v285
    %321 = vmatpush.bf16.msra.mxu0 %v284
    %322 = vmatpush.bf16.msra.mxu0 %v283
    %323 = vmatmul.bf16.gmra.mxu0 %v181
    %v324 = vpop.f32.mrf.mxu0
    %v325 = vadd.f32 %v217, %v324
    %v326 = vpop.f32.mrf.mxu0
    %v327 = vadd.f32 %v217, %v326
    %328 = vdwg.mxu0
    %329 = vmatpush.bf16.msra.mxu0 %v298
    %330 = vmatpush.bf16.msra.mxu0 %v297
    %331 = vmatpush.bf16.msra.mxu0 %v296
    %332 = vmatpush.bf16.msra.mxu0 %v295
    %333 = vmatpush.bf16.msra.mxu0 %v294
    %334 = vmatpush.bf16.msra.mxu0 %v293
    %335 = vmatpush.bf16.msra.mxu0 %v292
    %336 = vmatpush.bf16.msra.mxu0 %v291
    %337 = vmatmul.bf16.gmra.mxu0 %v182
    %v338 = vpop.f32.mrf.mxu0
    %v339 = vadd.f32 %v325, %v338
    %v340 = vpop.f32.mrf.mxu0
    %v341 = vadd.f32 %v327, %v340
    %342 = vdwg.mxu0
    %v343 = vmul.f32 %v339, 0.1
    %v344 = vmul.f32 %v341, 0.1
    %v345 = vmax.f32 %v339, %v343
    %v346 = vmax.f32 %v341, %v344
    %v347 = vpack.c.bf16 %v346, %v345
    %v348 = vld [vmem:[#allocation10] sm:$0xf]
    %v349 = vld [vmem:[#allocation10 + $0x4] sm:$0xf]
    %v350 = vld [vmem:[#allocation10 + $0x8] sm:$0xf]
    %v351 = vld [vmem:[#allocation10 + $0xc] sm:$0xf]
    %v352 = vld [vmem:[#allocation10 + $0x10] sm:$0xf]
    %v353 = vld [vmem:[#allocation10 + $0x14] sm:$0xf]
    %v354 = vld [vmem:[#allocation10 + $0x18] sm:$0xf]
    %v355 = vld [vmem:[#allocation10 + $0x1c] sm:$0xf]
    %v356 = vld [vmem:[#allocation10 + $0x20] sm:$0xf]
    %v357 = vld [vmem:[#allocation10 + $0x24] sm:$0xf]
    %v358 = vld [vmem:[#allocation10 + $0x28] sm:$0xf]
    %v359 = vld [vmem:[#allocation10 + $0x2c] sm:$0xf]
    %v360 = vld [vmem:[#allocation10 + $0x30] sm:$0xf]
    %v361 = vld [vmem:[#allocation10 + $0x34] sm:$0xf]
    %v362 = vld [vmem:[#allocation10 + $0x38] sm:$0xf]
    %v363 = vld [vmem:[#allocation10 + $0x3c] sm:$0xf]
    %v364 = vld [vmem:[%s6] sm:$0x1]
    %v366 = vperm.slane %v364, 0
    %v384 = vunpack.c.l.b16 %v348
    %v385 = vunpack.c.l.b16 %v349
    %v386 = vunpack.c.l.b16 %v350
    %v387 = vunpack.c.l.b16 %v351
    %v388 = vunpack.c.l.b16 %v352
    %v389 = vunpack.c.l.b16 %v353
    %v390 = vunpack.c.l.b16 %v354
    %v391 = vunpack.c.l.b16 %v355
    %v392 = vunpack.c.l.b16 %v356
    %v393 = vunpack.c.l.b16 %v357
    %v394 = vunpack.c.l.b16 %v358
    %v395 = vunpack.c.l.b16 %v359
    %v396 = vunpack.c.l.b16 %v360
    %v397 = vunpack.c.l.b16 %v361
    %v398 = vunpack.c.l.b16 %v362
    %v399 = vunpack.c.l.b16 %v363
    %v400 = vpack.c.b16 %v385, %v384
    %v401 = vpack.c.b16 %v387, %v386
    %v402 = vpack.c.b16 %v389, %v388
    %v403 = vpack.c.b16 %v391, %v390
    %v404 = vpack.c.b16 %v393, %v392
    %v405 = vpack.c.b16 %v395, %v394
    %v406 = vpack.c.b16 %v397, %v396
    %v407 = vpack.c.b16 %v399, %v398
    %416 = vmatpush.bf16.msra.mxu0 %v407
    %417 = vmatpush.bf16.msra.mxu0 %v406
    %418 = vmatpush.bf16.msra.mxu0 %v405
    %419 = vmatpush.bf16.msra.mxu0 %v404
    %420 = vmatpush.bf16.msra.mxu0 %v403
    %421 = vmatpush.bf16.msra.mxu0 %v402
    %422 = vmatpush.bf16.msra.mxu0 %v401
    %423 = vmatpush.bf16.msra.mxu0 %v400
    %424 = vmatmul.bf16.gmra.mxu0 %v347
    %v425 = vpop.f32.mrf.mxu0
    %v426 = vadd.f32 %v366, %v425
    %v427 = vpop.f32.mrf.mxu0
    %v428 = vadd.f32 %v366, %v427
    %429 = vdwg.mxu0
    %v430 = vmul.f32 %v426, 0.1
    %v431 = vmul.f32 %v428, 0.1
    %v432 = vmax.f32 %v426, %v430
    %v433 = vmax.f32 %v428, %v431
    %434 = vst [vmem:[#allocation11] sm:$0xff] %v432
    %435 = vst [vmem:[#allocation11 + $0x8] sm:$0xff] %v433
    // Predicated region
    $region50: #{tpu_custom_call.1} parent=1 // pred_check
      _
    $region51: #{tpu_custom_call.1} parent=1 // pred_check_branch
      %437 = sbr.rel (0) target = $region53
    $region52: #{tpu_custom_call.1} parent=1 // pred_region
      %439 = vsyncadd [#allocation4], 0
      %s440 = sshll.u32 [#allocation11], 4
      %s441 = int_to_ptr.vmem [resolvable:$true] %s440
      %s442 = sshll.u32 %s7, 4
      %s443 = int_to_ptr.hbm [resolvable:$true] %s442
      %448 = dma.vmem_to_hbm [thread:$0]  %s441, 256, %s443, [#allocation4], 128, 128, 8
    $region53: #{tpu_custom_call.1} parent=1 // pred_fallthru
      _
    // Predicated region
    $region54: #{tpu_custom_call.1} parent=1 // pred_check
      _
    $region55: #{tpu_custom_call.1} parent=1 // pred_check_branch
      %450 = sbr.rel (0) target = $region57
    $region56: #{tpu_custom_call.1} parent=1 // pred_region
      %452 = dma.done [#allocation4], 256
    $region57: #{tpu_custom_call.1} parent=1 // pred_fallthru
      _
    %453 = vsyncpa [#allocation3], 1
    %454 = vsyncpa [#allocation6], 1
    %455 = vsyncpa [#allocation9], 1
    %456 = vsyncpa [#allocation4], 1

</llo_original>
